<compile_context>
chip_gen: v7x
topology: tpu7x:2x2x1
jax: 0.10.0
libtpu: 0.0.40
codegen_flags: <defaults>
</compile_context>

<pallas_src>
import functools

import jax
import jax.numpy as jnp
from jax.experimental import pallas as pl
from jax.experimental.pallas import tpu as pltpu

BN_EPS = 1e-5
LANE = 128


def _round_up(x, m):
    return (x + m - 1) // m * m


def _vmem_capacity_bytes():
    try:
        return int(pltpu.get_tpu_info().vmem_capacity_bytes)
    except Exception:
        return 64 * 1024 * 1024  # conservative: v7x per-TC VMEM


def _vmem_tile_budget():
    # Keep roughly half of per-core VMEM for the tile plan; cap at 48 MiB so the
    # plan is identical on 128 MiB parts (v5e/v6e) and stays safe on v7x.
    return min(_vmem_capacity_bytes() // 2, 48 * 1024 * 1024)


# --------------------------------------------------------------------------- #
# Kernel: fused Linear(no bias) -> BatchNorm1d(train) -> ReLU on one column tile
# --------------------------------------------------------------------------- #
def _proj_layer_kernel(x_ref, w_ref, o_ref):
    # x_ref: [N, Dp]  bf16  (full batch, resident across grid steps)
    # w_ref: [Dp, TN] bf16  (pre-transposed weight column tile: h = x @ w)
    # o_ref: [N, TN]  bf16 (intermediate layers) or f32 (final layer)
    h = jnp.dot(x_ref[...], w_ref[...], preferred_element_type=jnp.float32)  # [N, TN]

    inv_n = 1.0 / x_ref.shape[0]
    # Single-pass BN statistics (no [N, TN] centered temporary).
    mean = jnp.sum(h, axis=0, keepdims=True) * inv_n                  # [1, TN]
    ex2 = jnp.sum(h * h, axis=0, keepdims=True) * inv_n               # [1, TN]
    var = jnp.maximum(ex2 - mean * mean, 0.0)                          # guard cancellation

    # gamma == 1, beta == 0 for a fresh BatchNorm1d: epilogue is a single FMA.
    scale = jax.lax.rsqrt(var + BN_EPS)                                # EUP
    shift = -mean * scale
    y = jnp.maximum(h * scale + shift, 0.0)
    o_ref[...] = y.astype(o_ref.dtype)


# --------------------------------------------------------------------------- #
# Tile / VMEM planning
# --------------------------------------------------------------------------- #
def _vmem_bytes(n, dp, tn, out_itemsize):
    n_pad = max(_round_up(n, 16), 16)        # conservative sublane padding
    x_bytes = 2 * n_pad * dp * 2             # resident x (count 2 buffers to be safe)
    w_bytes = 2 * dp * tn * 2                # double-buffered weight tile
    o_bytes = 2 * n_pad * tn * out_itemsize  # double-buffered output tile
    h_bytes = 2 * n_pad * tn * 4             # matmul accumulator + epilogue temporaries
    return x_bytes + w_bytes + o_bytes + h_bytes


def _pick_tile_n_out(n, dp, out_itemsize):
    budget = _vmem_tile_budget()
    for tn in (512, 256, 128):
        if dp % tn == 0 and _vmem_bytes(n, dp, tn, out_itemsize) <= budget:
            return tn
    if _vmem_bytes(n, dp, 128, out_itemsize) > budget:
        # TODO(synk): N-tiled two-pass BN fallback for huge activations on v7x.
        raise ValueError(
            f"resident activation block [{n}, {dp}] exceeds the VMEM budget "
            f"({budget} bytes); two-pass BN fallback not implemented")
    return 128


@functools.lru_cache(maxsize=None)
def _build_proj_layer(n, dp, tn, out_f32):
    out_dtype = jnp.float32 if out_f32 else jnp.bfloat16
    est = _vmem_bytes(n, dp, tn, 4 if out_f32 else 2)
    vmem_limit = int(min(_vmem_capacity_bytes(), est + 16 * 1024 * 1024))
    return pl.pallas_call(
        _proj_layer_kernel,
        out_shape=jax.ShapeDtypeStruct((n, dp), out_dtype),
        grid_spec=pltpu.PrefetchScalarGridSpec(
            num_scalar_prefetch=0,
            grid=(dp // tn,),
            in_specs=[
                pl.BlockSpec((n, dp), lambda j: (0, 0)),    # x: full, resident
                pl.BlockSpec((dp, tn), lambda j: (0, j)),   # W column tile
            ],
            out_specs=pl.BlockSpec((n, tn), lambda j: (0, j)),
        ),
        compiler_params=pltpu.CompilerParams(
            dimension_semantics=("parallel",),
            vmem_limit_bytes=vmem_limit,
        ),
    )


# --------------------------------------------------------------------------- #
# Whole-forward (jitted once per instance)
# --------------------------------------------------------------------------- #
def _forward_impl(x, weights, *, dp, in_dim, ft_sel):
    n = x.shape[0]
    x_f32 = x.astype(jnp.float32)
    cur = (jnp.zeros((n, dp), jnp.bfloat16)
           .at[:, :in_dim].set(x.astype(jnp.bfloat16)))
    hiddens = [x_f32]
    num_layers = len(weights)
    for li, w in enumerate(weights):
        out_f32 = (li == num_layers - 1)
        tn = _pick_tile_n_out(n, dp, 4 if out_f32 else 2)
        cur = _build_proj_layer(n, dp, tn, out_f32)(cur, w)
        hiddens.append(cur)
    proj = hiddens[-1][:, :in_dim]                       # final layer is f32
    sel = hiddens[ft_sel]
    ft = sel if ft_sel == 0 else sel[:, :in_dim].astype(jnp.float32)
    return proj, ft


# --------------------------------------------------------------------------- #
# Module wrapper
# --------------------------------------------------------------------------- #
class ProjectionHeadPallas:
    """JAX/Pallas port of ProjectionHead with proj_head_mode='nonlinear'."""

    def __init__(self, key, in_dim, out_dim, num_proj_layers, ft_proj_selector):
        self.in_dim = in_dim
        self.num_proj_layers = num_proj_layers
        self.ft_proj_selector = ft_proj_selector
        self.dp = _round_up(in_dim, LANE)    # lane-dense padded feature dim
        bound = 1.0 / float(in_dim) ** 0.5
        weights = []
        for _ in range(num_proj_layers):
            key, kw, kb = jax.random.split(key, 3)
            # PyTorch Linear default init: U(-1/sqrt(in_dim), 1/sqrt(in_dim)).
            w = jax.random.uniform(kw, (in_dim, in_dim), jnp.float32, -bound, bound)
            # Bias sampled for init parity but unused: cancelled exactly by the
            # training-mode BN mean subtraction.
            _ = jax.random.uniform(kb, (in_dim,), jnp.float32, -bound, bound)
            # Pad to lane multiples, store pre-transposed ([in, out]) in bf16.
            w_t = (jnp.zeros((self.dp, self.dp), jnp.float32)
                   .at[:in_dim, :in_dim].set(w.T)).astype(jnp.bfloat16)
            weights.append(w_t)
        self.weights = tuple(weights)
        # out_dim unused: the reference code's `if j != num_proj_layers` branch
        # is always true, so every layer is in_dim -> in_dim.
        del out_dim
        self._forward = jax.jit(functools.partial(
            _forward_impl, dp=self.dp, in_dim=in_dim, ft_sel=ft_proj_selector))

    def __call__(self, x):
        assert x.shape[1] == self.in_dim
        return self._forward(x, self.weights)


# --------------------------------------------------------------------------- #
# Self-test
# --------------------------------------------------------------------------- #
if __name__ == "__main__":
    key = jax.random.PRNGKey(0)
    k_in, k_params = jax.random.split(key)

    batch, in_dim, out_dim = 8, 32, 16
    num_proj_layers, ft_proj_selector = 3, 0

    x = jax.random.normal(k_in, (batch, in_dim), dtype=jnp.float32)

    head = ProjectionHeadPallas(k_params, in_dim, out_dim,
                                num_proj_layers, ft_proj_selector)
    proj_out, ft_out = head(x)
    jax.block_until_ready((proj_out, ft_out))

    # Plain-JAX reference with the same recipe: bf16 matmul / f32 stats,
    # one-pass variance, bf16 intermediate activations, f32 final layer.
    ref = x.astype(jnp.bfloat16)
    for li, w_t_p in enumerate(head.weights):
        w_t = w_t_p[:in_dim, :in_dim]                   # bf16 [in, out]
        h = jnp.dot(ref, w_t, preferred_element_type=jnp.float32)
        mean = h.mean(axis=0, keepdims=True)
        var = jnp.maximum((h * h).mean(axis=0, keepdims=True) - mean * mean, 0.0)
        scale = jax.lax.rsqrt(var + BN_EPS)
        y = jnp.maximum(h * scale - mean * scale, 0.0)
        ref = y if li == num_proj_layers - 1 else y.astype(jnp.bfloat16)

    assert proj_out.shape == (batch, in_dim)
    max_err = float(jnp.max(jnp.abs(proj_out - ref)))
    assert jnp.allclose(proj_out, ref, atol=2e-2, rtol=2e-2), max_err
    assert jnp.allclose(ft_out, x)  # ft_proj_selector=0 -> the input itself

    print("KERNEL_OK")
</pallas_src>

<mosaic_0001>
module attributes {stable_mosaic.version = 11 : i64} {
  func.func @_proj_layer_kernel(%arg0: i32, %arg1: memref<8x128xbf16, #tpu.memory_space<vmem>>, %arg2: memref<128x128xbf16, #tpu.memory_space<vmem>>, %arg3: memref<8x128xbf16, #tpu.memory_space<vmem>>) attributes {dimension_semantics = [#tpu.dimension_semantics<parallel>], iteration_bounds = array<i64: 1>, scalar_prefetch = 0 : i64, scratch_operands = 0 : i64, tpu.core_type = #tpu.core_type<tc>, window_params = [{pipeline_mode = #tpu.pipeline_mode<synchronous>, transform_indices = @transform_0, window_bounds = array<i64: 8, 128>}, {transform_indices = @transform_1, window_bounds = array<i64: 128, 128>}, {transform_indices = @transform_2, window_bounds = array<i64: 8, 128>}]} {
    %c0 = arith.constant 0 : index
    %c0_0 = arith.constant 0 : index
    %0 = vector.load %arg1[%c0, %c0_0] : memref<8x128xbf16, #tpu.memory_space<vmem>>, vector<8x128xbf16>
    %c0_1 = arith.constant 0 : index
    %c0_2 = arith.constant 0 : index
    %1 = vector.load %arg2[%c0_1, %c0_2] : memref<128x128xbf16, #tpu.memory_space<vmem>>, vector<128x128xbf16>
    %cst = arith.constant dense<0.000000e+00> : vector<8x128xf32>
    %2 = tpu.matmul %0, %1, %cst {dimension_numbers = #tpu.dot_dimension_numbers<[1], [0], [0], [1], [0, 0, 1, 1], [], []>} : vector<8x128xbf16>, vector<128x128xbf16>, vector<8x128xf32> -> vector<8x128xf32>
    %cst_3 = arith.constant dense<0.000000e+00> : vector<128xf32>
    %3 = vector.multi_reduction <add>, %2, %cst_3 [0] : vector<8x128xf32> to vector<128xf32>
    %4 = vector.shape_cast %3 : vector<128xf32> to vector<1x128xf32>
    %cst_4 = arith.constant 1.250000e-01 : f32
    %5 = vector.broadcast %cst_4 : f32 to vector<1x128xf32>
    %6 = arith.mulf %4, %5 : vector<1x128xf32>
    %7 = arith.mulf %2, %2 : vector<8x128xf32>
    %cst_5 = arith.constant dense<0.000000e+00> : vector<128xf32>
    %8 = vector.multi_reduction <add>, %7, %cst_5 [0] : vector<8x128xf32> to vector<128xf32>
    %9 = vector.shape_cast %8 : vector<128xf32> to vector<1x128xf32>
    %cst_6 = arith.constant 1.250000e-01 : f32
    %10 = vector.broadcast %cst_6 : f32 to vector<1x128xf32>
    %11 = arith.mulf %9, %10 : vector<1x128xf32>
    %12 = arith.mulf %6, %6 : vector<1x128xf32>
    %13 = arith.subf %11, %12 : vector<1x128xf32>
    %cst_7 = arith.constant 0.000000e+00 : f32
    %14 = vector.broadcast %cst_7 : f32 to vector<1x128xf32>
    %15 = arith.maximumf %13, %14 : vector<1x128xf32>
    %cst_8 = arith.constant 9.99999974E-6 : f32
    %16 = vector.broadcast %cst_8 : f32 to vector<1x128xf32>
    %17 = arith.addf %15, %16 : vector<1x128xf32>
    %18 = math.rsqrt %17 : vector<1x128xf32>
    %cst_9 = arith.constant 0.000000e+00 : f32
    %19 = vector.broadcast %cst_9 : f32 to vector<1x128xf32>
    %20 = arith.subf %19, %6 : vector<1x128xf32>
    %21 = arith.mulf %20, %18 : vector<1x128xf32>
    %22 = vector.broadcast %18 : vector<1x128xf32> to vector<8x128xf32>
    %23 = arith.mulf %2, %22 : vector<8x128xf32>
    %24 = vector.broadcast %21 : vector<1x128xf32> to vector<8x128xf32>
    %25 = arith.addf %23, %24 : vector<8x128xf32>
    %cst_10 = arith.constant 0.000000e+00 : f32
    %26 = vector.broadcast %cst_10 : f32 to vector<8x128xf32>
    %27 = arith.maximumf %25, %26 : vector<8x128xf32>
    %28 = arith.truncf %27 : vector<8x128xf32> to vector<8x128xbf16>
    %c0_11 = arith.constant 0 : index
    %c0_12 = arith.constant 0 : index
    %29 = vector.load %arg3[%c0_11, %c0_12] : memref<8x128xbf16, #tpu.memory_space<vmem>>, vector<8x128xbf16>
    tpu.vector_store %arg3[%c0_11, %c0_12], %28 {strides = array<i32>} : memref<8x128xbf16, #tpu.memory_space<vmem>>, vector<8x128xbf16>,
    return
  }
  func.func @transform_0(%arg0: i32) -> (i32, i32) {
    %c0_i32 = arith.constant 0 : i32
    %c0_i32_0 = arith.constant 0 : i32
    %c0_i32_1 = arith.constant 0 : i32
    return %c0_i32, %c0_i32_0 : i32, i32
  }
  func.func @transform_1(%arg0: i32) -> (i32, i32) {
    %c0_i32 = arith.constant 0 : i32
    %c0_i32_0 = arith.constant 0 : i32
    return %c0_i32, %arg0 : i32, i32
  }
  func.func @transform_2(%arg0: i32) -> (i32, i32) {
    %c0_i32 = arith.constant 0 : i32
    %c0_i32_0 = arith.constant 0 : i32
    return %c0_i32, %arg0 : i32, i32
  }
}

module attributes {stable_mosaic.version = 11 : i64} {
  func.func @_proj_layer_kernel(%arg0: i32, %arg1: memref<8x128xbf16, #tpu.memory_space<vmem>>, %arg2: memref<128x128xbf16, #tpu.memory_space<vmem>>, %arg3: memref<8x128xf32, #tpu.memory_space<vmem>>) attributes {dimension_semantics = [#tpu.dimension_semantics<parallel>], iteration_bounds = array<i64: 1>, scalar_prefetch = 0 : i64, scratch_operands = 0 : i64, tpu.core_type = #tpu.core_type<tc>, window_params = [{pipeline_mode = #tpu.pipeline_mode<synchronous>, transform_indices = @transform_0, window_bounds = array<i64: 8, 128>}, {transform_indices = @transform_1, window_bounds = array<i64: 128, 128>}, {transform_indices = @transform_2, window_bounds = array<i64: 8, 128>}]} {
    %c0 = arith.constant 0 : index
    %c0_0 = arith.constant 0 : index
    %0 = vector.load %arg1[%c0, %c0_0] : memref<8x128xbf16, #tpu.memory_space<vmem>>, vector<8x128xbf16>
    %c0_1 = arith.constant 0 : index
    %c0_2 = arith.constant 0 : index
    %1 = vector.load %arg2[%c0_1, %c0_2] : memref<128x128xbf16, #tpu.memory_space<vmem>>, vector<128x128xbf16>
    %cst = arith.constant dense<0.000000e+00> : vector<8x128xf32>
    %2 = tpu.matmul %0, %1, %cst {dimension_numbers = #tpu.dot_dimension_numbers<[1], [0], [0], [1], [0, 0, 1, 1], [], []>} : vector<8x128xbf16>, vector<128x128xbf16>, vector<8x128xf32> -> vector<8x128xf32>
    %cst_3 = arith.constant dense<0.000000e+00> : vector<128xf32>
    %3 = vector.multi_reduction <add>, %2, %cst_3 [0] : vector<8x128xf32> to vector<128xf32>
    %4 = vector.shape_cast %3 : vector<128xf32> to vector<1x128xf32>
    %cst_4 = arith.constant 1.250000e-01 : f32
    %5 = vector.broadcast %cst_4 : f32 to vector<1x128xf32>
    %6 = arith.mulf %4, %5 : vector<1x128xf32>
    %7 = arith.mulf %2, %2 : vector<8x128xf32>
    %cst_5 = arith.constant dense<0.000000e+00> : vector<128xf32>
    %8 = vector.multi_reduction <add>, %7, %cst_5 [0] : vector<8x128xf32> to vector<128xf32>
    %9 = vector.shape_cast %8 : vector<128xf32> to vector<1x128xf32>
    %cst_6 = arith.constant 1.250000e-01 : f32
    %10 = vector.broadcast %cst_6 : f32 to vector<1x128xf32>
    %11 = arith.mulf %9, %10 : vector<1x128xf32>
    %12 = arith.mulf %6, %6 : vector<1x128xf32>
    %13 = arith.subf %11, %12 : vector<1x128xf32>
    %cst_7 = arith.constant 0.000000e+00 : f32
    %14 = vector.broadcast %cst_7 : f32 to vector<1x128xf32>
    %15 = arith.maximumf %13, %14 : vector<1x128xf32>
    %cst_8 = arith.constant 9.99999974E-6 : f32
    %16 = vector.broadcast %cst_8 : f32 to vector<1x128xf32>
    %17 = arith.addf %15, %16 : vector<1x128xf32>
    %18 = math.rsqrt %17 : vector<1x128xf32>
    %cst_9 = arith.constant 0.000000e+00 : f32
    %19 = vector.broadcast %cst_9 : f32 to vector<1x128xf32>
    %20 = arith.subf %19, %6 : vector<1x128xf32>
    %21 = arith.mulf %20, %18 : vector<1x128xf32>
    %22 = vector.broadcast %18 : vector<1x128xf32> to vector<8x128xf32>
    %23 = arith.mulf %2, %22 : vector<8x128xf32>
    %24 = vector.broadcast %21 : vector<1x128xf32> to vector<8x128xf32>
    %25 = arith.addf %23, %24 : vector<8x128xf32>
    %cst_10 = arith.constant 0.000000e+00 : f32
    %26 = vector.broadcast %cst_10 : f32 to vector<8x128xf32>
    %27 = arith.maximumf %25, %26 : vector<8x128xf32>
    %c0_11 = arith.constant 0 : index
    %c0_12 = arith.constant 0 : index
    %28 = vector.load %arg3[%c0_11, %c0_12] : memref<8x128xf32, #tpu.memory_space<vmem>>, vector<8x128xf32>
    tpu.vector_store %arg3[%c0_11, %c0_12], %27 {strides = array<i32>} : memref<8x128xf32, #tpu.memory_space<vmem>>, vector<8x128xf32>,
    return
  }
  func.func @transform_0(%arg0: i32) -> (i32, i32) {
    %c0_i32 = arith.constant 0 : i32
    %c0_i32_0 = arith.constant 0 : i32
    %c0_i32_1 = arith.constant 0 : i32
    return %c0_i32, %c0_i32_0 : i32, i32
  }
  func.func @transform_1(%arg0: i32) -> (i32, i32) {
    %c0_i32 = arith.constant 0 : i32
    %c0_i32_0 = arith.constant 0 : i32
    return %c0_i32, %arg0 : i32, i32
  }
  func.func @transform_2(%arg0: i32) -> (i32, i32) {
    %c0_i32 = arith.constant 0 : i32
    %c0_i32_0 = arith.constant 0 : i32
    return %c0_i32, %arg0 : i32, i32
  }
}

module attributes {stable_mosaic.version = 11 : i64} {
  func.func @_proj_layer_kernel(%arg0: i32, %arg1: memref<8x128xbf16, #tpu.memory_space<vmem>>, %arg2: memref<128x128xbf16, #tpu.memory_space<vmem>>, %arg3: memref<8x128xbf16, #tpu.memory_space<vmem>>) attributes {dimension_semantics = [#tpu.dimension_semantics<parallel>], iteration_bounds = array<i64: 1>, scalar_prefetch = 0 : i64, scratch_operands = 0 : i64, tpu.core_type = #tpu.core_type<tc>, window_params = [{pipeline_mode = #tpu.pipeline_mode<synchronous>, transform_indices = @transform_0, window_bounds = array<i64: 8, 128>}, {transform_indices = @transform_1, window_bounds = array<i64: 128, 128>}, {transform_indices = @transform_2, window_bounds = array<i64: 8, 128>}]} {
    %c0 = arith.constant 0 : index
    %c0_0 = arith.constant 0 : index
    %0 = vector.load %arg1[%c0, %c0_0] : memref<8x128xbf16, #tpu.memory_space<vmem>>, vector<8x128xbf16>
    %c0_1 = arith.constant 0 : index
    %c0_2 = arith.constant 0 : index
    %1 = vector.load %arg2[%c0_1, %c0_2] : memref<128x128xbf16, #tpu.memory_space<vmem>>, vector<128x128xbf16>
    %cst = arith.constant dense<0.000000e+00> : vector<8x128xf32>
    %2 = tpu.matmul %0, %1, %cst {dimension_numbers = #tpu.dot_dimension_numbers<[1], [0], [0], [1], [0, 0, 1, 1], [], []>} : vector<8x128xbf16>, vector<128x128xbf16>, vector<8x128xf32> -> vector<8x128xf32>
    %cst_3 = arith.constant dense<0.000000e+00> : vector<128xf32>
    %3 = vector.multi_reduction <add>, %2, %cst_3 [0] : vector<8x128xf32> to vector<128xf32>
    %4 = vector.shape_cast %3 : vector<128xf32> to vector<1x128xf32>
    %cst_4 = arith.constant 1.250000e-01 : f32
    %5 = vector.broadcast %cst_4 : f32 to vector<1x128xf32>
    %6 = arith.mulf %4, %5 : vector<1x128xf32>
    %7 = arith.mulf %2, %2 : vector<8x128xf32>
    %cst_5 = arith.constant dense<0.000000e+00> : vector<128xf32>
    %8 = vector.multi_reduction <add>, %7, %cst_5 [0] : vector<8x128xf32> to vector<128xf32>
    %9 = vector.shape_cast %8 : vector<128xf32> to vector<1x128xf32>
    %cst_6 = arith.constant 1.250000e-01 : f32
    %10 = vector.broadcast %cst_6 : f32 to vector<1x128xf32>
    %11 = arith.mulf %9, %10 : vector<1x128xf32>
    %12 = arith.mulf %6, %6 : vector<1x128xf32>
    %13 = arith.subf %11, %12 : vector<1x128xf32>
    %cst_7 = arith.constant 0.000000e+00 : f32
    %14 = vector.broadcast %cst_7 : f32 to vector<1x128xf32>
    %15 = arith.maximumf %13, %14 : vector<1x128xf32>
    %cst_8 = arith.constant 9.99999974E-6 : f32
    %16 = vector.broadcast %cst_8 : f32 to vector<1x128xf32>
    %17 = arith.addf %15, %16 : vector<1x128xf32>
    %18 = math.rsqrt %17 : vector<1x128xf32>
    %cst_9 = arith.constant 0.000000e+00 : f32
    %19 = vector.broadcast %cst_9 : f32 to vector<1x128xf32>
    %20 = arith.subf %19, %6 : vector<1x128xf32>
    %21 = arith.mulf %20, %18 : vector<1x128xf32>
    %22 = vector.broadcast %18 : vector<1x128xf32> to vector<8x128xf32>
    %23 = arith.mulf %2, %22 : vector<8x128xf32>
    %24 = vector.broadcast %21 : vector<1x128xf32> to vector<8x128xf32>
    %25 = arith.addf %23, %24 : vector<8x128xf32>
    %cst_10 = arith.constant 0.000000e+00 : f32
    %26 = vector.broadcast %cst_10 : f32 to vector<8x128xf32>
    %27 = arith.maximumf %25, %26 : vector<8x128xf32>
    %28 = arith.truncf %27 : vector<8x128xf32> to vector<8x128xbf16>
    %c0_11 = arith.constant 0 : index
    %c0_12 = arith.constant 0 : index
    %29 = vector.load %arg3[%c0_11, %c0_12] : memref<8x128xbf16, #tpu.memory_space<vmem>>, vector<8x128xbf16>
    tpu.vector_store %arg3[%c0_11, %c0_12], %28 {strides = array<i32>} : memref<8x128xbf16, #tpu.memory_space<vmem>>, vector<8x128xbf16>,
    return
  }
  func.func @transform_0(%arg0: i32) -> (i32, i32) {
    %c0_i32 = arith.constant 0 : i32
    %c0_i32_0 = arith.constant 0 : i32
    %c0_i32_1 = arith.constant 0 : i32
    return %c0_i32, %c0_i32_0 : i32, i32
  }
  func.func @transform_1(%arg0: i32) -> (i32, i32) {
    %c0_i32 = arith.constant 0 : i32
    %c0_i32_0 = arith.constant 0 : i32
    return %c0_i32, %arg0 : i32, i32
  }
  func.func @transform_2(%arg0: i32) -> (i32, i32) {
    %c0_i32 = arith.constant 0 : i32
    %c0_i32_0 = arith.constant 0 : i32
    return %c0_i32, %arg0 : i32, i32
  }
}

</mosaic_0001>

<llo_original>
// kernel: _forward_impl.3
$region0: #{_forward_impl.3}
  #allocation0 [shape = 'u32[]', space=smem, size = 0x4, offset = 0x4, fixed_abs, tag = 'smem constant byte address 0x4 - core index']
  #allocation1 [shape = 'u32[144,128]{1,0:T(1,128)}', space=vmem, size = 0x12000, scoped, tag = 'internal scratch']
  %s0 = inlined_call_operand.vmem [shape: bf16[8,128], index: 0, kind: input, shape index: {}]
  %s1 = inlined_call_operand.hbm [shape: bf16[128,128], index: 1, kind: input, shape index: {}]
  %s2 = inlined_call_operand.vmem [shape: bf16[8,128], index: 2, kind: output, shape index: {}]
  %s3 = sld [smem:[#allocation0]]
  $region22: #{_forward_impl.3} parent=0
    _
  %s5 = ssub.s32 1, %s3
  %s6 = scalar_select 0, %s5, %s3
  $region1: #{_forward_impl.3} parent=0
    #allocation2 [shape = 'u8[32768]{0}', space=vmem, size = 0x8000, scoped, tag = 'input window, operand 1, single buffered']
    #allocation3 [shape = 's32[1]{0}', space=sflag, size = 0x4, scoped, tag = 'scoped memory for _forward_impl.3']
    %7 = vsyncpa [#allocation3], 0
    // Predicated region
    $region2: #{_forward_impl.3} parent=1 // pred_check
      _
    $region3: #{_forward_impl.3} parent=1 // pred_check_branch
      %9 = sbr.rel (0) target = $region5
    $region4: #{_forward_impl.3} parent=1 // pred_region
      _
    $region5: #{_forward_impl.3} parent=1 // pred_fallthru
      _
    // Predicated region
    $region6: #{_forward_impl.3} parent=1 // pred_check
      _
    $region7: #{_forward_impl.3} parent=1 // pred_check_branch
      %11 = sbr.rel (0) target = $region9
    $region8: #{_forward_impl.3} parent=1 // pred_region
      %s13 = ssub.s32 1024, 1024
      %14 = vsyncadd [#allocation3], %s13
      %s15 = sshll.u32 [#allocation2], 4
      %s16 = int_to_ptr.vmem [resolvable:$true] %s15
      %21 = dma.hbm_to_vmem [thread:$0]  %s1, 1024, %s16, [#allocation3], 64, 64, 4
    $region9: #{_forward_impl.3} parent=1 // pred_fallthru
      _
    // Predicated region
    $region10: #{_forward_impl.3} parent=1 // pred_check
      _
    $region11: #{_forward_impl.3} parent=1 // pred_check_branch
      %23 = sbr.rel (0) target = $region13
    $region12: #{_forward_impl.3} parent=1 // pred_region
      %24 = dma.done [#allocation3], 1024
    $region13: #{_forward_impl.3} parent=1 // pred_fallthru
      _
    %v26 = vld [vmem:[%s0] sm:$0xf]
    %v27 = vld [vmem:[#allocation2] sm:$0xf]
    %v28 = vld [vmem:[#allocation2 + $0x4] sm:$0xf]
    %v29 = vld [vmem:[#allocation2 + $0x8] sm:$0xf]
    %v30 = vld [vmem:[#allocation2 + $0xc] sm:$0xf]
    %v31 = vld [vmem:[#allocation2 + $0x10] sm:$0xf]
    %v32 = vld [vmem:[#allocation2 + $0x14] sm:$0xf]
    %v33 = vld [vmem:[#allocation2 + $0x18] sm:$0xf]
    %v34 = vld [vmem:[#allocation2 + $0x1c] sm:$0xf]
    %v35 = vld [vmem:[#allocation2 + $0x20] sm:$0xf]
    %v36 = vld [vmem:[#allocation2 + $0x24] sm:$0xf]
    %v37 = vld [vmem:[#allocation2 + $0x28] sm:$0xf]
    %v38 = vld [vmem:[#allocation2 + $0x2c] sm:$0xf]
    %v39 = vld [vmem:[#allocation2 + $0x30] sm:$0xf]
    %v40 = vld [vmem:[#allocation2 + $0x34] sm:$0xf]
    %v41 = vld [vmem:[#allocation2 + $0x38] sm:$0xf]
    %v42 = vld [vmem:[#allocation2 + $0x3c] sm:$0xf]
    %v59 = vunpack.c.l.b16 %v27
    %v60 = vunpack.c.l.b16 %v28
    %v61 = vunpack.c.l.b16 %v29
    %v62 = vunpack.c.l.b16 %v30
    %v63 = vunpack.c.l.b16 %v31
    %v64 = vunpack.c.l.b16 %v32
    %v65 = vunpack.c.l.b16 %v33
    %v66 = vunpack.c.l.b16 %v34
    %v67 = vunpack.c.l.b16 %v35
    %v68 = vunpack.c.l.b16 %v36
    %v69 = vunpack.c.l.b16 %v37
    %v70 = vunpack.c.l.b16 %v38
    %v71 = vunpack.c.l.b16 %v39
    %v72 = vunpack.c.l.b16 %v40
    %v73 = vunpack.c.l.b16 %v41
    %v74 = vunpack.c.l.b16 %v42
    %v75 = vpack.c.b16 %v60, %v59
    %v76 = vpack.c.b16 %v62, %v61
    %v77 = vpack.c.b16 %v64, %v63
    %v78 = vpack.c.b16 %v66, %v65
    %v79 = vpack.c.b16 %v68, %v67
    %v80 = vpack.c.b16 %v70, %v69
    %v81 = vpack.c.b16 %v72, %v71
    %v82 = vpack.c.b16 %v74, %v73
    %91 = vmatprep.subr.bf16.mxu0 0
    %92 = vmatpush1.bf16.msra.mxu0 %v75
    %93 = vmatprep.subr.bf16.mxu0 0
    %94 = vmatpush1.bf16.msra.mxu0 %v76
    %95 = vmatprep.subr.bf16.mxu0 0
    %96 = vmatpush1.bf16.msra.mxu0 %v77
    %97 = vmatprep.subr.bf16.mxu0 0
    %98 = vmatpush1.bf16.msra.mxu0 %v78
    %99 = vmatprep.subr.bf16.mxu0 0
    %100 = vmatpush1.bf16.msra.mxu0 %v79
    %101 = vmatprep.subr.bf16.mxu0 0
    %102 = vmatpush1.bf16.msra.mxu0 %v80
    %103 = vmatprep.subr.bf16.mxu0 0
    %104 = vmatpush1.bf16.msra.mxu0 %v81
    %105 = vmatprep.subr.bf16.mxu0 0
    %106 = vmatpush1.bf16.msra.mxu0 %v82
    %107 = vmatprep.subr.bf16.mxu0 0
    %108 = vmatpush1.bf16.msra.mxu0 0
    %109 = vmatprep.subr.bf16.mxu0 0
    %110 = vmatpush1.bf16.msra.mxu0 0
    %111 = vmatprep.subr.bf16.mxu0 0
    %112 = vmatpush1.bf16.msra.mxu0 0
    %113 = vmatprep.subr.bf16.mxu0 0
    %114 = vmatpush1.bf16.msra.mxu0 0
    %115 = vmatprep.subr.bf16.mxu0 0
    %116 = vmatpush1.bf16.msra.mxu0 0
    %117 = vmatprep.subr.bf16.mxu0 0
    %118 = vmatpush1.bf16.msra.mxu0 0
    %119 = vmatprep.subr.bf16.mxu0 0
    %120 = vmatpush1.bf16.msra.mxu0 0
    %121 = vmatprep.subr.bf16.mxu0 0
    %122 = vmatpush1.bf16.msra.mxu0 0
    %123 = vmatprep.mubr.bf16.mxu0 0
    %124 = vmatmul.mubr.bf16.gmra.mrb[0].mxu0 %v26
    %v125 = vpop.f32.mrb[0].mxu0
    %v126 = vadd.f32 0.0, %v125
    %v127 = vpop.f32.mrb[0].mxu0
    %v128 = vpop.f32.mrb[0].mxu0
    %v129 = vpop.f32.mrb[0].mxu0
    %130 = vdwg.mxu0
    %v131 = vrot.slane %v126, 4
    %v132 = vadd.f32 %v126, %v131
    %v133 = vrot.slane %v132, 2
    %v134 = vadd.f32 %v132, %v133
    %v135 = vrot.slane %v134, 1
    %v136 = vadd.f32 %v134, %v135
    %v137 = vmul.f32 %v136, 0.125
    %v138 = vmul.f32 %v126, %v126
    %v139 = vrot.slane %v138, 4
    %v140 = vadd.f32 %v138, %v139
    %v141 = vrot.slane %v140, 2
    %v142 = vadd.f32 %v140, %v141
    %v143 = vrot.slane %v142, 1
    %v144 = vadd.f32 %v142, %v143
    %v145 = vmul.f32 %v144, 0.125
    %v146 = vmul.f32 %v137, %v137
    %v147 = vsub.f32 %v145, %v146
    %v148 = vmax.f32 %v147, 0.0
    %v149 = vadd.f32 %v148, 1e-05
    %v150 = vrsqrt.pop %v149
    %v151 = vsub.f32 0.0, %v137
    %v152 = vmul.f32 %v151, %v150
    %v153 = vmul.f32 %v126, %v150
    %v154 = vadd.f32 %v153, %v152
    %v155 = vmax.f32 %v154, 0.0
    %v156 = vpack.c.bf16 %v155, %v155
    %157 = vst [vmem:[%s2] sm:$0xf] %v156
    // Predicated region
    $region14: #{_forward_impl.3} parent=1 // pred_check
      _
    $region15: #{_forward_impl.3} parent=1 // pred_check_branch
      %159 = sbr.rel (0) target = $region17
    $region16: #{_forward_impl.3} parent=1 // pred_region
      _
    $region17: #{_forward_impl.3} parent=1 // pred_fallthru
      _
    // Predicated region
    $region18: #{_forward_impl.3} parent=1 // pred_check
      _
    $region19: #{_forward_impl.3} parent=1 // pred_check_branch
      %161 = sbr.rel (0) target = $region21
    $region20: #{_forward_impl.3} parent=1 // pred_region
      _
    $region21: #{_forward_impl.3} parent=1 // pred_fallthru
      _
    %162 = vsyncpa [#allocation3], 1

// kernel: _forward_impl.5
$region0: #{_forward_impl.5}
  #allocation0 [shape = 'u32[]', space=smem, size = 0x4, offset = 0x4, fixed_abs, tag = 'smem constant byte address 0x4 - core index']
  #allocation1 [shape = 'u32[144,128]{1,0:T(1,128)}', space=vmem, size = 0x12000, scoped, tag = 'internal scratch']
  %s0 = inlined_call_operand.vmem [shape: bf16[8,128], index: 0, kind: input, shape index: {}]
  %s1 = inlined_call_operand.vmem [shape: bf16[128,128], index: 1, kind: input, shape index: {}]
  %s2 = inlined_call_operand.hbm [shape: f32[8,128], index: 2, kind: output, shape index: {}]
  %s3 = sld [smem:[#allocation0]]
  $region18: #{_forward_impl.5} parent=0
    _
  %s5 = ssub.s32 1, %s3
  %s6 = scalar_select 0, %s5, %s3
  $region1: #{_forward_impl.5} parent=0
    #allocation2 [shape = 'u8[4096]{0}', space=vmem, size = 0x1000, scoped, tag = 'output window, operand 0, single buffered']
    #allocation3 [shape = 's32[1]{0}', space=sflag, size = 0x4, scoped, tag = 'scoped memory for _forward_impl.5']
    %7 = vsyncpa [#allocation3], 0
    // Predicated region
    $region2: #{_forward_impl.5} parent=1 // pred_check
      _
    $region3: #{_forward_impl.5} parent=1 // pred_check_branch
      %9 = sbr.rel (0) target = $region5
    $region4: #{_forward_impl.5} parent=1 // pred_region
      _
    $region5: #{_forward_impl.5} parent=1 // pred_fallthru
      _
    // Predicated region
    $region6: #{_forward_impl.5} parent=1 // pred_check
      _
    $region7: #{_forward_impl.5} parent=1 // pred_check_branch
      %11 = sbr.rel (0) target = $region9
    $region8: #{_forward_impl.5} parent=1 // pred_region
      _
    $region9: #{_forward_impl.5} parent=1 // pred_fallthru
      _
    %v13 = vld [vmem:[%s0] sm:$0xf]
    %v14 = vld [vmem:[%s1] sm:$0xf]
    %v15 = vld [vmem:[%s1 + $0x4] sm:$0xf]
    %v16 = vld [vmem:[%s1 + $0x8] sm:$0xf]
    %v17 = vld [vmem:[%s1 + $0xc] sm:$0xf]
    %v18 = vld [vmem:[%s1 + $0x10] sm:$0xf]
    %v19 = vld [vmem:[%s1 + $0x14] sm:$0xf]
    %v20 = vld [vmem:[%s1 + $0x18] sm:$0xf]
    %v21 = vld [vmem:[%s1 + $0x1c] sm:$0xf]
    %v22 = vld [vmem:[%s1 + $0x20] sm:$0xf]
    %v23 = vld [vmem:[%s1 + $0x24] sm:$0xf]
    %v24 = vld [vmem:[%s1 + $0x28] sm:$0xf]
    %v25 = vld [vmem:[%s1 + $0x2c] sm:$0xf]
    %v26 = vld [vmem:[%s1 + $0x30] sm:$0xf]
    %v27 = vld [vmem:[%s1 + $0x34] sm:$0xf]
    %v28 = vld [vmem:[%s1 + $0x38] sm:$0xf]
    %v29 = vld [vmem:[%s1 + $0x3c] sm:$0xf]
    %v46 = vunpack.c.l.b16 %v14
    %v47 = vunpack.c.l.b16 %v15
    %v48 = vunpack.c.l.b16 %v16
    %v49 = vunpack.c.l.b16 %v17
    %v50 = vunpack.c.l.b16 %v18
    %v51 = vunpack.c.l.b16 %v19
    %v52 = vunpack.c.l.b16 %v20
    %v53 = vunpack.c.l.b16 %v21
    %v54 = vunpack.c.l.b16 %v22
    %v55 = vunpack.c.l.b16 %v23
    %v56 = vunpack.c.l.b16 %v24
    %v57 = vunpack.c.l.b16 %v25
    %v58 = vunpack.c.l.b16 %v26
    %v59 = vunpack.c.l.b16 %v27
    %v60 = vunpack.c.l.b16 %v28
    %v61 = vunpack.c.l.b16 %v29
    %v62 = vpack.c.b16 %v47, %v46
    %v63 = vpack.c.b16 %v49, %v48
    %v64 = vpack.c.b16 %v51, %v50
    %v65 = vpack.c.b16 %v53, %v52
    %v66 = vpack.c.b16 %v55, %v54
    %v67 = vpack.c.b16 %v57, %v56
    %v68 = vpack.c.b16 %v59, %v58
    %v69 = vpack.c.b16 %v61, %v60
    %78 = vmatprep.subr.bf16.mxu0 0
    %79 = vmatpush1.bf16.msra.mxu0 %v62
    %80 = vmatprep.subr.bf16.mxu0 0
    %81 = vmatpush1.bf16.msra.mxu0 %v63
    %82 = vmatprep.subr.bf16.mxu0 0
    %83 = vmatpush1.bf16.msra.mxu0 %v64
    %84 = vmatprep.subr.bf16.mxu0 0
    %85 = vmatpush1.bf16.msra.mxu0 %v65
    %86 = vmatprep.subr.bf16.mxu0 0
    %87 = vmatpush1.bf16.msra.mxu0 %v66
    %88 = vmatprep.subr.bf16.mxu0 0
    %89 = vmatpush1.bf16.msra.mxu0 %v67
    %90 = vmatprep.subr.bf16.mxu0 0
    %91 = vmatpush1.bf16.msra.mxu0 %v68
    %92 = vmatprep.subr.bf16.mxu0 0
    %93 = vmatpush1.bf16.msra.mxu0 %v69
    %94 = vmatprep.subr.bf16.mxu0 0
    %95 = vmatpush1.bf16.msra.mxu0 0
    %96 = vmatprep.subr.bf16.mxu0 0
    %97 = vmatpush1.bf16.msra.mxu0 0
    %98 = vmatprep.subr.bf16.mxu0 0
    %99 = vmatpush1.bf16.msra.mxu0 0
    %100 = vmatprep.subr.bf16.mxu0 0
    %101 = vmatpush1.bf16.msra.mxu0 0
    %102 = vmatprep.subr.bf16.mxu0 0
    %103 = vmatpush1.bf16.msra.mxu0 0
    %104 = vmatprep.subr.bf16.mxu0 0
    %105 = vmatpush1.bf16.msra.mxu0 0
    %106 = vmatprep.subr.bf16.mxu0 0
    %107 = vmatpush1.bf16.msra.mxu0 0
    %108 = vmatprep.subr.bf16.mxu0 0
    %109 = vmatpush1.bf16.msra.mxu0 0
    %110 = vmatprep.mubr.bf16.mxu0 0
    %111 = vmatmul.mubr.bf16.gmra.mrb[0].mxu0 %v13
    %v112 = vpop.f32.mrb[0].mxu0
    %v113 = vadd.f32 0.0, %v112
    %v114 = vpop.f32.mrb[0].mxu0
    %v115 = vpop.f32.mrb[0].mxu0
    %v116 = vpop.f32.mrb[0].mxu0
    %117 = vdwg.mxu0
    %v118 = vrot.slane %v113, 4
    %v119 = vadd.f32 %v113, %v118
    %v120 = vrot.slane %v119, 2
    %v121 = vadd.f32 %v119, %v120
    %v122 = vrot.slane %v121, 1
    %v123 = vadd.f32 %v121, %v122
    %v124 = vmul.f32 %v123, 0.125
    %v125 = vmul.f32 %v113, %v113
    %v126 = vrot.slane %v125, 4
    %v127 = vadd.f32 %v125, %v126
    %v128 = vrot.slane %v127, 2
    %v129 = vadd.f32 %v127, %v128
    %v130 = vrot.slane %v129, 1
    %v131 = vadd.f32 %v129, %v130
    %v132 = vmul.f32 %v131, 0.125
    %v133 = vmul.f32 %v124, %v124
    %v134 = vsub.f32 %v132, %v133
    %v135 = vmax.f32 %v134, 0.0
    %v136 = vadd.f32 %v135, 1e-05
    %v137 = vrsqrt.pop %v136
    %v138 = vsub.f32 0.0, %v124
    %v139 = vmul.f32 %v138, %v137
    %v140 = vmul.f32 %v113, %v137
    %v141 = vadd.f32 %v140, %v139
    %v142 = vmax.f32 %v141, 0.0
    %143 = vst [vmem:[#allocation2] sm:$0xff] %v142
    // Predicated region
    $region10: #{_forward_impl.5} parent=1 // pred_check
      _
    $region11: #{_forward_impl.5} parent=1 // pred_check_branch
      %145 = sbr.rel (0) target = $region13
    $region12: #{_forward_impl.5} parent=1 // pred_region
      %s147 = ssub.s32 128, 128
      %148 = vsyncadd [#allocation3], %s147
      %s150 = sshll.u32 [#allocation2], 4
      %s151 = int_to_ptr.vmem [resolvable:$true] %s150
      %153 = dma.vmem_to_hbm [thread:$0]  %s151, 128, %s2, [#allocation3]
    $region13: #{_forward_impl.5} parent=1 // pred_fallthru
      _
    // Predicated region
    $region14: #{_forward_impl.5} parent=1 // pred_check
      _
    $region15: #{_forward_impl.5} parent=1 // pred_check_branch
      %155 = sbr.rel (0) target = $region17
    $region16: #{_forward_impl.5} parent=1 // pred_region
      %156 = dma.done [#allocation3], 128
    $region17: #{_forward_impl.5} parent=1 // pred_fallthru
      _
    %157 = vsyncpa [#allocation3], 1

// kernel: _forward_impl.4
$region0: #{_forward_impl.4}
  #allocation0 [shape = 'u32[]', space=smem, size = 0x4, offset = 0x4, fixed_abs, tag = 'smem constant byte address 0x4 - core index']
  #allocation1 [shape = 'u32[144,128]{1,0:T(1,128)}', space=vmem, size = 0x12000, scoped, tag = 'internal scratch']
  %s0 = inlined_call_operand.vmem [shape: bf16[8,128], index: 0, kind: input, shape index: {}]
  %s1 = inlined_call_operand.vmem [shape: bf16[128,128], index: 1, kind: input, shape index: {}]
  %s2 = inlined_call_operand.vmem [shape: bf16[8,128], index: 2, kind: output, shape index: {}]
  %s3 = sld [smem:[#allocation0]]
  $region18: #{_forward_impl.4} parent=0
    _
  %s5 = ssub.s32 1, %s3
  %s6 = scalar_select 0, %s5, %s3
  // Predicated region
  $region2: #{_forward_impl.4} parent=0 // pred_check
    _
  $region3: #{_forward_impl.4} parent=0 // pred_check_branch
    %8 = sbr.rel (0) target = $region5
  $region4: #{_forward_impl.4} parent=0 // pred_region
    _
  $region5: #{_forward_impl.4} parent=0 // pred_fallthru
    _
  // Predicated region
  $region6: #{_forward_impl.4} parent=0 // pred_check
    _
  $region7: #{_forward_impl.4} parent=0 // pred_check_branch
    %10 = sbr.rel (0) target = $region9
  $region8: #{_forward_impl.4} parent=0 // pred_region
    _
  $region9: #{_forward_impl.4} parent=0 // pred_fallthru
    _
  %v12 = vld [vmem:[%s0] sm:$0xf]
  %v13 = vld [vmem:[%s1] sm:$0xf]
  %v14 = vld [vmem:[%s1 + $0x4] sm:$0xf]
  %v15 = vld [vmem:[%s1 + $0x8] sm:$0xf]
  %v16 = vld [vmem:[%s1 + $0xc] sm:$0xf]
  %v17 = vld [vmem:[%s1 + $0x10] sm:$0xf]
  %v18 = vld [vmem:[%s1 + $0x14] sm:$0xf]
  %v19 = vld [vmem:[%s1 + $0x18] sm:$0xf]
  %v20 = vld [vmem:[%s1 + $0x1c] sm:$0xf]
  %v21 = vld [vmem:[%s1 + $0x20] sm:$0xf]
  %v22 = vld [vmem:[%s1 + $0x24] sm:$0xf]
  %v23 = vld [vmem:[%s1 + $0x28] sm:$0xf]
  %v24 = vld [vmem:[%s1 + $0x2c] sm:$0xf]
  %v25 = vld [vmem:[%s1 + $0x30] sm:$0xf]
  %v26 = vld [vmem:[%s1 + $0x34] sm:$0xf]
  %v27 = vld [vmem:[%s1 + $0x38] sm:$0xf]
  %v28 = vld [vmem:[%s1 + $0x3c] sm:$0xf]
  %v45 = vunpack.c.l.b16 %v13
  %v46 = vunpack.c.l.b16 %v14
  %v47 = vunpack.c.l.b16 %v15
  %v48 = vunpack.c.l.b16 %v16
  %v49 = vunpack.c.l.b16 %v17
  %v50 = vunpack.c.l.b16 %v18
  %v51 = vunpack.c.l.b16 %v19
  %v52 = vunpack.c.l.b16 %v20
  %v53 = vunpack.c.l.b16 %v21
  %v54 = vunpack.c.l.b16 %v22
  %v55 = vunpack.c.l.b16 %v23
  %v56 = vunpack.c.l.b16 %v24
  %v57 = vunpack.c.l.b16 %v25
  %v58 = vunpack.c.l.b16 %v26
  %v59 = vunpack.c.l.b16 %v27
  %v60 = vunpack.c.l.b16 %v28
  %v61 = vpack.c.b16 %v46, %v45
  %v62 = vpack.c.b16 %v48, %v47
  %v63 = vpack.c.b16 %v50, %v49
  %v64 = vpack.c.b16 %v52, %v51
  %v65 = vpack.c.b16 %v54, %v53
  %v66 = vpack.c.b16 %v56, %v55
  %v67 = vpack.c.b16 %v58, %v57
  %v68 = vpack.c.b16 %v60, %v59
  %77 = vmatprep.subr.bf16.mxu0 0
  %78 = vmatpush1.bf16.msra.mxu0 %v61
  %79 = vmatprep.subr.bf16.mxu0 0
  %80 = vmatpush1.bf16.msra.mxu0 %v62
  %81 = vmatprep.subr.bf16.mxu0 0
  %82 = vmatpush1.bf16.msra.mxu0 %v63
  %83 = vmatprep.subr.bf16.mxu0 0
  %84 = vmatpush1.bf16.msra.mxu0 %v64
  %85 = vmatprep.subr.bf16.mxu0 0
  %86 = vmatpush1.bf16.msra.mxu0 %v65
  %87 = vmatprep.subr.bf16.mxu0 0
  %88 = vmatpush1.bf16.msra.mxu0 %v66
  %89 = vmatprep.subr.bf16.mxu0 0
  %90 = vmatpush1.bf16.msra.mxu0 %v67
  %91 = vmatprep.subr.bf16.mxu0 0
  %92 = vmatpush1.bf16.msra.mxu0 %v68
  %93 = vmatprep.subr.bf16.mxu0 0
  %94 = vmatpush1.bf16.msra.mxu0 0
  %95 = vmatprep.subr.bf16.mxu0 0
  %96 = vmatpush1.bf16.msra.mxu0 0
  %97 = vmatprep.subr.bf16.mxu0 0
  %98 = vmatpush1.bf16.msra.mxu0 0
  %99 = vmatprep.subr.bf16.mxu0 0
  %100 = vmatpush1.bf16.msra.mxu0 0
  %101 = vmatprep.subr.bf16.mxu0 0
  %102 = vmatpush1.bf16.msra.mxu0 0
  %103 = vmatprep.subr.bf16.mxu0 0
  %104 = vmatpush1.bf16.msra.mxu0 0
  %105 = vmatprep.subr.bf16.mxu0 0
  %106 = vmatpush1.bf16.msra.mxu0 0
  %107 = vmatprep.subr.bf16.mxu0 0
  %108 = vmatpush1.bf16.msra.mxu0 0
  %109 = vmatprep.mubr.bf16.mxu0 0
  %110 = vmatmul.mubr.bf16.gmra.mrb[0].mxu0 %v12
  %v111 = vpop.f32.mrb[0].mxu0
  %v112 = vadd.f32 0.0, %v111
  %v113 = vpop.f32.mrb[0].mxu0
  %v114 = vpop.f32.mrb[0].mxu0
  %v115 = vpop.f32.mrb[0].mxu0
  %116 = vdwg.mxu0
  %v117 = vrot.slane %v112, 4
  %v118 = vadd.f32 %v112, %v117
  %v119 = vrot.slane %v118, 2
  %v120 = vadd.f32 %v118, %v119
  %v121 = vrot.slane %v120, 1
  %v122 = vadd.f32 %v120, %v121
  %v123 = vmul.f32 %v122, 0.125
  %v124 = vmul.f32 %v112, %v112
  %v125 = vrot.slane %v124, 4
  %v126 = vadd.f32 %v124, %v125
  %v127 = vrot.slane %v126, 2
  %v128 = vadd.f32 %v126, %v127
  %v129 = vrot.slane %v128, 1
  %v130 = vadd.f32 %v128, %v129
  %v131 = vmul.f32 %v130, 0.125
  %v132 = vmul.f32 %v123, %v123
  %v133 = vsub.f32 %v131, %v132
  %v134 = vmax.f32 %v133, 0.0
  %v135 = vadd.f32 %v134, 1e-05
  %v136 = vrsqrt.pop %v135
  %v137 = vsub.f32 0.0, %v123
  %v138 = vmul.f32 %v137, %v136
  %v139 = vmul.f32 %v112, %v136
  %v140 = vadd.f32 %v139, %v138
  %v141 = vmax.f32 %v140, 0.0
  %v142 = vpack.c.bf16 %v141, %v141
  %143 = vst [vmem:[%s2] sm:$0xf] %v142
  // Predicated region
  $region10: #{_forward_impl.4} parent=0 // pred_check
    _
  $region11: #{_forward_impl.4} parent=0 // pred_check_branch
    %145 = sbr.rel (0) target = $region13
  $region12: #{_forward_impl.4} parent=0 // pred_region
    _
  $region13: #{_forward_impl.4} parent=0 // pred_fallthru
    _
  // Predicated region
  $region14: #{_forward_impl.4} parent=0 // pred_check
    _
  $region15: #{_forward_impl.4} parent=0 // pred_check_branch
    %147 = sbr.rel (0) target = $region17
  $region16: #{_forward_impl.4} parent=0 // pred_region
    _
  $region17: #{_forward_impl.4} parent=0 // pred_fallthru
    _

</llo_original>
